<compile_context>
chip_gen: v7x
topology: tpu7x:2x2x1
jax: 0.10.0
libtpu: 0.0.40
codegen_flags: <defaults>
</compile_context>

<pallas_src>
import math

import jax
import jax.numpy as jnp
from jax.experimental import pallas as pl
from jax.experimental.pallas import tpu as pltpu

_VMEM_LIMIT_BYTES = 48 * 1024 * 1024      # safe on v5e/v6e (128 MiB) and v7x (64 MiB/TC)
_FUSED_LIMIT_BYTES = 8 * 1024 * 1024      # below this footprint, use one fused call


def _round_up(v, m):
    return (v + m - 1) // m * m


def _pad_to(arr, shape):
    pads = [(0, s - d) for d, s in zip(arr.shape, shape)]
    if all(p == (0, 0) for p in pads):
        return arr
    return jnp.pad(arr, pads)


# ---------------------------------------------------------------------------
# Kernels
# ---------------------------------------------------------------------------
def _fused_kernel(x_ref, w_ref, adj_ref, b_ref, o_ref):
    """Small-problem path: whole problem resident in VMEM, one invocation."""
    support = jnp.dot(x_ref[...], w_ref[...], preferred_element_type=jnp.float32)
    out = jnp.dot(adj_ref[...], support.astype(adj_ref.dtype),
                  preferred_element_type=jnp.float32)
    o_ref[...] = out + b_ref[...]


def _support_kernel(x_ref, w_ref, s_ref):
    """support = X @ W, computed exactly once (row-tiled, no redundancy)."""
    s_ref[...] = jnp.dot(x_ref[...], w_ref[...],
                         preferred_element_type=jnp.float32).astype(s_ref.dtype)


def _aggregate_kernel(adj_ref, s_ref, b_ref, o_ref, acc_ref):
    """out_tile = sum_k adj[i,k] @ support[k] + bias (f32 accumulator)."""
    k = pl.program_id(1)

    @pl.when(k == 0)
    def _init():
        acc_ref[...] = jnp.zeros_like(acc_ref)

    acc_ref[...] += jnp.dot(adj_ref[...], s_ref[...],
                            preferred_element_type=jnp.float32)

    @pl.when(k == pl.num_programs(1) - 1)
    def _finalize():
        o_ref[...] = (acc_ref[...] + b_ref[...]).astype(o_ref.dtype)


def _adj_block_spec(tm, tk):
    """Adjacency tile spec; request 3-deep buffering when the API supports it."""
    index_map = lambda i, k: (i, k)
    try:
        if hasattr(pl, "Buffered"):
            return pl.BlockSpec((tm, tk), index_map, pipeline_mode=pl.Buffered(3))
    except TypeError:
        pass
    return pl.BlockSpec((tm, tk), index_map)


# ---------------------------------------------------------------------------
# Drivers
# ---------------------------------------------------------------------------
def _gcn_fused(x, adj, w, b):
    N, F = x.shape
    Hp = w.shape[1]
    isz = x.dtype.itemsize
    return pl.pallas_call(
        _fused_kernel,
        out_shape=jax.ShapeDtypeStruct((N, Hp), jnp.float32),
        cost_estimate=pl.CostEstimate(
            flops=2 * N * F * Hp + 2 * N * N * Hp,
            transcendentals=0,
            bytes_accessed=(N * F + F * Hp + N * N) * isz + (N * Hp + Hp) * 4,
        ),
        compiler_params=pltpu.CompilerParams(vmem_limit_bytes=_VMEM_LIMIT_BYTES),
    )(x, w, adj, b)


def _gcn_tiled(x, adj, w, b, *, tm, tk):
    N, F = x.shape
    Hp = w.shape[1]
    cdt = x.dtype
    isz = jnp.dtype(cdt).itemsize

    # Tile sizes: rows multiple of 8, K multiple of 128; pad N so both divide.
    tm = _round_up(max(8, min(tm, _round_up(N, 8))), 8)
    tk = _round_up(max(128, min(tk, _round_up(N, 128))), 128)
    Np = _round_up(N, math.lcm(tm, tk))
    x_p = _pad_to(x, (Np, F))
    adj_p = _pad_to(adj, (Np, Np))

    # ---- Stage 1: support = X @ W (computed once, not per adjacency tile) ----
    support = pl.pallas_call(
        _support_kernel,
        out_shape=jax.ShapeDtypeStruct((Np, Hp), cdt),
        grid_spec=pltpu.PrefetchScalarGridSpec(
            num_scalar_prefetch=0,
            grid=(Np // tm,),
            in_specs=[
                pl.BlockSpec((tm, F), lambda i: (i, 0)),
                pl.BlockSpec((F, Hp), lambda i: (0, 0)),
            ],
            out_specs=pl.BlockSpec((tm, Hp), lambda i: (i, 0)),
        ),
        compiler_params=pltpu.CompilerParams(
            dimension_semantics=("parallel",),
            vmem_limit_bytes=_VMEM_LIMIT_BYTES,
        ),
        cost_estimate=pl.CostEstimate(
            flops=2 * Np * F * Hp,
            transcendentals=0,
            bytes_accessed=(Np * F + F * Hp + Np * Hp) * isz,
        ),
    )(x_p, w)

    # ---- Stage 2: out = adj @ support + bias, K-tiled with f32 accumulator ----
    out = pl.pallas_call(
        _aggregate_kernel,
        out_shape=jax.ShapeDtypeStruct((Np, Hp), jnp.float32),
        grid_spec=pltpu.PrefetchScalarGridSpec(
            num_scalar_prefetch=0,
            grid=(Np // tm, Np // tk),
            in_specs=[
                _adj_block_spec(tm, tk),                       # streamed adj tiles
                pl.BlockSpec((tk, Hp), lambda i, k: (k, 0)),   # support K-slab
                pl.BlockSpec((1, Hp), lambda i, k: (0, 0)),    # bias (resident)
            ],
            out_specs=pl.BlockSpec((tm, Hp), lambda i, k: (i, 0)),
            scratch_shapes=[pltpu.VMEM((tm, Hp), jnp.float32)],
        ),
        compiler_params=pltpu.CompilerParams(
            dimension_semantics=("parallel", "arbitrary"),
            vmem_limit_bytes=_VMEM_LIMIT_BYTES,
        ),
        cost_estimate=pl.CostEstimate(
            flops=2 * Np * Np * Hp,
            transcendentals=0,
            bytes_accessed=Np * Np * isz + Np * Hp * isz + Np * Hp * 4 + Hp * 4,
        ),
    )(adj_p, support, b)
    return out


def gcn_layer(x, adj, weight, bias, *, tm=256, tk=512, use_bf16=False,
              force_path=None):
    """GCNLayer forward: adj @ (x @ weight) + bias.

    x: (N, F) f32, adj: (N, N) f32 (dense), weight: (F, H), bias: (H,).
    use_bf16 streams x/W/adj/support in bf16 (f32 accumulation).
    force_path in {None, "fused", "tiled"}.
    """
    N, F = x.shape
    H = weight.shape[1]
    assert adj.shape == (N, N)

    Hp = _round_up(H, 128)                      # lane-dense output / MXU columns
    cdt = jnp.bfloat16 if use_bf16 else jnp.float32
    isz = 2 if use_bf16 else 4

    w_p = _pad_to(weight, (F, Hp)).astype(cdt)
    b_p = _pad_to(bias.reshape(1, H), (1, Hp)).astype(jnp.float32)
    x_c = x.astype(cdt)
    adj_c = adj.astype(cdt)

    fused_bytes = (N * F + F * Hp + N * N) * isz + (N * Hp + Hp) * 4
    use_fused = (force_path == "fused"
                 or (force_path is None and fused_bytes <= _FUSED_LIMIT_BYTES))

    if use_fused:
        out = _gcn_fused(x_c, adj_c, w_p, b_p)
        return out[:, :H]
    out = _gcn_tiled(x_c, adj_c, w_p, b_p, tm=tm, tk=tk)
    return out[:N, :H]


def gcn_ref(x, adj, weight, bias):
    return adj @ (x @ weight) + bias[None, :]


# ---------------------------------------------------------------------------
# Self-test
# ---------------------------------------------------------------------------
if __name__ == "__main__":
    key = jax.random.PRNGKey(0)
    kx, kadj, kw, kb = jax.random.split(key, 4)

    def make_inputs(N, F, H):
        kx2, kadj2, kw2, kb2 = (jax.random.fold_in(k, N) for k in (kx, kadj, kw, kb))
        x = jax.random.normal(kx2, (N, F), dtype=jnp.float32)
        a = (jax.random.uniform(kadj2, (N, N)) < 0.1).astype(jnp.float32)
        a = jnp.maximum(a, a.T) + jnp.eye(N, dtype=jnp.float32)
        a = a / jnp.sum(a, axis=1, keepdims=True)       # row-normalized dense adj
        stdv = 1.0 / math.sqrt(H)                       # reset_parameters()
        w = jax.random.uniform(kw2, (F, H), minval=-stdv, maxval=stdv,
                               dtype=jnp.float32)
        b = jax.random.uniform(kb2, (H,), minval=-stdv, maxval=stdv,
                               dtype=jnp.float32)
        return x, a, w, b

    # 1) Small problem -> single fused invocation (no grid, no redundant X@W).
    x, a, w, b = make_inputs(128, 64, 32)
    out = jax.block_until_ready(gcn_layer(x, a, w, b))
    ref = gcn_ref(x, a, w, b)
    assert out.shape == ref.shape
    assert jnp.allclose(out, ref, atol=1e-4, rtol=1e-4), "fused f32 mismatch"

    # 2) Larger problem -> two-stage tiled path (hoisted support, K-tiled agg).
    x, a, w, b = make_inputs(512, 64, 32)
    ref = gcn_ref(x, a, w, b)
    out = jax.block_until_ready(
        gcn_layer(x, a, w, b, tm=256, tk=256, force_path="tiled"))
    assert out.shape == ref.shape
    assert jnp.allclose(out, ref, atol=1e-4, rtol=1e-4), "tiled f32 mismatch"

    # 3) bf16-streamed variant (mem-bound adj stream halved; f32 accumulation).
    out_bf16 = jax.block_until_ready(
        gcn_layer(x, a, w, b, tm=256, tk=256, use_bf16=True, force_path="tiled"))
    assert jnp.allclose(out_bf16, ref, atol=3e-2, rtol=3e-2), "tiled bf16 mismatch"

    # TODO(synk): dropout / LeakyReLU exist in GCNLayer.__init__ but are never
    # applied in forward(), so they are intentionally not implemented.
    print("KERNEL_OK")
</pallas_src>

<mosaic_0001>
module attributes {stable_mosaic.version = 11 : i64} {
  func.func @_fused_kernel(%arg0: memref<128x64xf32, #tpu.memory_space<vmem>>, %arg1: memref<64x128xf32, #tpu.memory_space<vmem>>, %arg2: memref<128x128xf32, #tpu.memory_space<vmem>>, %arg3: memref<1x128xf32, #tpu.memory_space<vmem>>, %arg4: memref<128x128xf32, #tpu.memory_space<vmem>>) attributes {dimension_semantics = [], scalar_prefetch = 0 : i64, scratch_operands = 0 : i64, tpu.core_type = #tpu.core_type<tc>} {
    %c0 = arith.constant 0 : index
    %c0_0 = arith.constant 0 : index
    %0 = vector.load %arg0[%c0, %c0_0] : memref<128x64xf32, #tpu.memory_space<vmem>>, vector<128x64xf32>
    %c0_1 = arith.constant 0 : index
    %c0_2 = arith.constant 0 : index
    %1 = vector.load %arg1[%c0_1, %c0_2] : memref<64x128xf32, #tpu.memory_space<vmem>>, vector<64x128xf32>
    %cst = arith.constant dense<0.000000e+00> : vector<128x128xf32>
    %2 = tpu.matmul %0, %1, %cst {dimension_numbers = #tpu.dot_dimension_numbers<[1], [0], [0], [1], [0, 0, 1, 1], [], []>} : vector<128x64xf32>, vector<64x128xf32>, vector<128x128xf32> -> vector<128x128xf32>
    %c0_3 = arith.constant 0 : index
    %c0_4 = arith.constant 0 : index
    %3 = vector.load %arg2[%c0_3, %c0_4] : memref<128x128xf32, #tpu.memory_space<vmem>>, vector<128x128xf32>
    %cst_5 = arith.constant dense<0.000000e+00> : vector<128x128xf32>
    %4 = tpu.matmul %3, %2, %cst_5 {dimension_numbers = #tpu.dot_dimension_numbers<[1], [0], [0], [1], [0, 0, 1, 1], [], []>} : vector<128x128xf32>, vector<128x128xf32>, vector<128x128xf32> -> vector<128x128xf32>
    %c0_6 = arith.constant 0 : index
    %c0_7 = arith.constant 0 : index
    %5 = vector.load %arg3[%c0_6, %c0_7] : memref<1x128xf32, #tpu.memory_space<vmem>>, vector<1x128xf32>
    %6 = vector.broadcast %5 : vector<1x128xf32> to vector<128x128xf32>
    %7 = arith.addf %4, %6 : vector<128x128xf32>
    %c0_8 = arith.constant 0 : index
    %c0_9 = arith.constant 0 : index
    %8 = vector.load %arg4[%c0_8, %c0_9] : memref<128x128xf32, #tpu.memory_space<vmem>>, vector<128x128xf32>
    tpu.vector_store %arg4[%c0_8, %c0_9], %7 {strides = array<i32>} : memref<128x128xf32, #tpu.memory_space<vmem>>, vector<128x128xf32>,
    return
  }
}

</mosaic_0001>

<llo_original>
// kernel: tpu_custom_call.1
$region0: #{tpu_custom_call.1}
  #allocation0 [shape = 'u32[]', space=smem, size = 0x4, offset = 0x4, fixed_abs, tag = 'smem constant byte address 0x4 - core index']
  #allocation1 [shape = 'u32[144,128]{1,0:T(1,128)}', space=vmem, size = 0x12000, scoped, tag = 'internal scratch']
  %s0 = inlined_call_operand.vmem [shape: f32[128,64], index: 0, kind: input, shape index: {}]
  %s1 = inlined_call_operand.vmem [shape: f32[64,128], index: 1, kind: input, shape index: {}]
  %s2 = inlined_call_operand.vmem [shape: f32[128,128], index: 2, kind: input, shape index: {}]
  %s3 = inlined_call_operand.vmem [shape: f32[1,128], index: 3, kind: input, shape index: {}]
  %s4 = inlined_call_operand.hbm [shape: f32[128,128], index: 4, kind: output, shape index: {}]
  %s5 = sld [smem:[#allocation0]]
  $region26: #{tpu_custom_call.1} parent=0
    _
  %s7 = ssub.s32 1, %s5
  %s8 = scalar_select 0, %s7, %s5
  $region1: #{tpu_custom_call.1} parent=0
    #allocation2 [shape = 'u8[65536]{0}', space=vmem, size = 0x10000, scoped, tag = 'output window, operand 0, single buffered']
    #allocation3 [shape = 's32[1]{0}', space=sflag, size = 0x4, scoped, tag = 'scoped memory for tpu_custom_call.1']
    %9 = vsyncpa [#allocation3], 0
    // Predicated region
    $region2: #{tpu_custom_call.1} parent=1 // pred_check
      _
    $region3: #{tpu_custom_call.1} parent=1 // pred_check_branch
      %11 = sbr.rel (0) target = $region5
    $region4: #{tpu_custom_call.1} parent=1 // pred_region
      _
    $region5: #{tpu_custom_call.1} parent=1 // pred_fallthru
      _
    // Predicated region
    $region6: #{tpu_custom_call.1} parent=1 // pred_check
      _
    $region7: #{tpu_custom_call.1} parent=1 // pred_check_branch
      %13 = sbr.rel (0) target = $region9
    $region8: #{tpu_custom_call.1} parent=1 // pred_region
      _
    $region9: #{tpu_custom_call.1} parent=1 // pred_fallthru
      _
    // Predicated region
    $region10: #{tpu_custom_call.1} parent=1 // pred_check
      _
    $region11: #{tpu_custom_call.1} parent=1 // pred_check_branch
      %15 = sbr.rel (0) target = $region13
    $region12: #{tpu_custom_call.1} parent=1 // pred_region
      _
    $region13: #{tpu_custom_call.1} parent=1 // pred_fallthru
      _
    // Predicated region
    $region14: #{tpu_custom_call.1} parent=1 // pred_check
      _
    $region15: #{tpu_custom_call.1} parent=1 // pred_check_branch
      %17 = sbr.rel (0) target = $region17
    $region16: #{tpu_custom_call.1} parent=1 // pred_region
      _
    $region17: #{tpu_custom_call.1} parent=1 // pred_fallthru
      _
    %v18 = vld [vmem:[%s0] sm:$0xff]
    %v19 = vld [vmem:[%s0 + $0x8] sm:$0xff]
    %v20 = vld [vmem:[%s0 + $0x10] sm:$0xff]
    %v21 = vld [vmem:[%s0 + $0x18] sm:$0xff]
    %v22 = vld [vmem:[%s0 + $0x20] sm:$0xff]
    %v23 = vld [vmem:[%s0 + $0x28] sm:$0xff]
    %v24 = vld [vmem:[%s0 + $0x30] sm:$0xff]
    %v25 = vld [vmem:[%s0 + $0x38] sm:$0xff]
    %v26 = vld [vmem:[%s0 + $0x40] sm:$0xff]
    %v27 = vld [vmem:[%s0 + $0x48] sm:$0xff]
    %v28 = vld [vmem:[%s0 + $0x50] sm:$0xff]
    %v29 = vld [vmem:[%s0 + $0x58] sm:$0xff]
    %v30 = vld [vmem:[%s0 + $0x60] sm:$0xff]
    %v31 = vld [vmem:[%s0 + $0x68] sm:$0xff]
    %v32 = vld [vmem:[%s0 + $0x70] sm:$0xff]
    %v33 = vld [vmem:[%s0 + $0x78] sm:$0xff]
    %v34 = vld [vmem:[%s1] sm:$0xff]
    %v35 = vld [vmem:[%s1 + $0x8] sm:$0xff]
    %v36 = vld [vmem:[%s1 + $0x10] sm:$0xff]
    %v37 = vld [vmem:[%s1 + $0x18] sm:$0xff]
    %v38 = vld [vmem:[%s1 + $0x20] sm:$0xff]
    %v39 = vld [vmem:[%s1 + $0x28] sm:$0xff]
    %v40 = vld [vmem:[%s1 + $0x30] sm:$0xff]
    %v41 = vld [vmem:[%s1 + $0x38] sm:$0xff]
    %vm42 = vcmask 523264
    %v44 = vsel %vm42, %v18, 0
    %v47 = vsel %vm42, %v19, 0
    %v50 = vsel %vm42, %v20, 0
    %v53 = vsel %vm42, %v21, 0
    %v56 = vsel %vm42, %v22, 0
    %v59 = vsel %vm42, %v23, 0
    %v62 = vsel %vm42, %v24, 0
    %v65 = vsel %vm42, %v25, 0
    %v68 = vsel %vm42, %v26, 0
    %v71 = vsel %vm42, %v27, 0
    %v74 = vsel %vm42, %v28, 0
    %v77 = vsel %vm42, %v29, 0
    %v80 = vsel %vm42, %v30, 0
    %v83 = vsel %vm42, %v31, 0
    %v86 = vsel %vm42, %v32, 0
    %v89 = vsel %vm42, %v33, 0
    %91 = vmatprep.subr.mxu0 0.0
    %92 = vmatpush1.msra.mxu0 %v34
    %93 = vmatprep.subr.mxu0 0.0
    %94 = vmatpush1.msra.mxu0 %v35
    %95 = vmatprep.subr.mxu0 0.0
    %96 = vmatpush1.msra.mxu0 %v36
    %97 = vmatprep.subr.mxu0 0.0
    %98 = vmatpush1.msra.mxu0 %v37
    %99 = vmatprep.subr.mxu0 0.0
    %100 = vmatpush1.msra.mxu0 %v38
    %101 = vmatprep.subr.mxu0 0.0
    %102 = vmatpush1.msra.mxu0 %v39
    %103 = vmatprep.subr.mxu0 0.0
    %104 = vmatpush1.msra.mxu0 %v40
    %105 = vmatprep.subr.mxu0 0.0
    %106 = vmatpush1.msra.mxu0 %v41
    %107 = vmatprep.subr.mxu0 0.0
    %108 = vmatpush1.msra.mxu0 0.0
    %109 = vmatprep.subr.mxu0 0.0
    %110 = vmatpush1.msra.mxu0 0.0
    %111 = vmatprep.subr.mxu0 0.0
    %112 = vmatpush1.msra.mxu0 0.0
    %113 = vmatprep.subr.mxu0 0.0
    %114 = vmatpush1.msra.mxu0 0.0
    %115 = vmatprep.subr.mxu0 0.0
    %116 = vmatpush1.msra.mxu0 0.0
    %117 = vmatprep.subr.mxu0 0.0
    %118 = vmatpush1.msra.mxu0 0.0
    %119 = vmatprep.subr.mxu0 0.0
    %120 = vmatpush1.msra.mxu0 0.0
    %121 = vmatprep.subr.mxu0 0.0
    %122 = vmatpush1.msra.mxu0 0.0
    %123 = vmatprep.subr.mxu0 0.0
    %124 = vmatpush1.msra.mxu0 0.0
    %125 = vmatprep.subr.mxu0 0.0
    %126 = vmatpush1.msra.mxu0 0.0
    %127 = vmatprep.subr.mxu0 0.0
    %128 = vmatpush1.msra.mxu0 0.0
    %129 = vmatprep.subr.mxu0 0.0
    %130 = vmatpush1.msra.mxu0 0.0
    %131 = vmatprep.subr.mxu0 0.0
    %132 = vmatpush1.msra.mxu0 0.0
    %133 = vmatprep.subr.mxu0 0.0
    %134 = vmatpush1.msra.mxu0 0.0
    %135 = vmatprep.subr.mxu0 0.0
    %136 = vmatpush1.msra.mxu0 0.0
    %137 = vmatprep.subr.mxu0 0.0
    %138 = vmatpush1.msra.mxu0 0.0
    %139 = vmatprep.subr.mxu0 0.0
    %140 = vmatpush1.msra.mxu0 0.0
    %141 = vmatprep.subr.mxu0 0.0
    %142 = vmatpush1.msra.mxu0 0.0
    %143 = vmatprep.subr.mxu0 0.0
    %144 = vmatpush1.msra.mxu0 0.0
    %145 = vmatprep.subr.mxu0 0.0
    %146 = vmatpush1.msra.mxu0 0.0
    %147 = vmatprep.subr.mxu0 0.0
    %148 = vmatpush1.msra.mxu0 0.0
    %149 = vmatprep.subr.mxu0 0.0
    %150 = vmatpush1.msra.mxu0 0.0
    %151 = vmatprep.subr.mxu0 0.0
    %152 = vmatpush1.msra.mxu0 0.0
    %153 = vmatprep.subr.mxu0 0.0
    %154 = vmatpush1.msra.mxu0 0.0
    %155 = vmatprep.mubr.f32.mxu0 0.0
    %156 = vmatmul.mubr.f32.gmra.mrb[0].mxu0 %v44
    %v157 = vpop.f32.mrb[0].mxu0
    %v158 = vadd.f32 0.0, %v157
    %v159 = vpop.f32.mrb[0].mxu0
    %160 = vmatprep.mubr.f32.mxu0 0.0
    %161 = vmatmul.mubr.f32.gmra.mrb[0].mxu0 %v47
    %v162 = vpop.f32.mrb[0].mxu0
    %v163 = vadd.f32 0.0, %v162
    %v164 = vpop.f32.mrb[0].mxu0
    %165 = vmatprep.mubr.f32.mxu0 0.0
    %166 = vmatmul.mubr.f32.gmra.mrb[0].mxu0 %v50
    %v167 = vpop.f32.mrb[0].mxu0
    %v168 = vadd.f32 0.0, %v167
    %v169 = vpop.f32.mrb[0].mxu0
    %170 = vmatprep.mubr.f32.mxu0 0.0
    %171 = vmatmul.mubr.f32.gmra.mrb[0].mxu0 %v53
    %v172 = vpop.f32.mrb[0].mxu0
    %v173 = vadd.f32 0.0, %v172
    %v174 = vpop.f32.mrb[0].mxu0
    %175 = vmatprep.mubr.f32.mxu0 0.0
    %176 = vmatmul.mubr.f32.gmra.mrb[0].mxu0 %v56
    %v177 = vpop.f32.mrb[0].mxu0
    %v178 = vadd.f32 0.0, %v177
    %v179 = vpop.f32.mrb[0].mxu0
    %180 = vmatprep.mubr.f32.mxu0 0.0
    %181 = vmatmul.mubr.f32.gmra.mrb[0].mxu0 %v59
    %v182 = vpop.f32.mrb[0].mxu0
    %v183 = vadd.f32 0.0, %v182
    %v184 = vpop.f32.mrb[0].mxu0
    %185 = vmatprep.mubr.f32.mxu0 0.0
    %186 = vmatmul.mubr.f32.gmra.mrb[0].mxu0 %v62
    %v187 = vpop.f32.mrb[0].mxu0
    %v188 = vadd.f32 0.0, %v187
    %v189 = vpop.f32.mrb[0].mxu0
    %190 = vmatprep.mubr.f32.mxu0 0.0
    %191 = vmatmul.mubr.f32.gmra.mrb[0].mxu0 %v65
    %v192 = vpop.f32.mrb[0].mxu0
    %v193 = vadd.f32 0.0, %v192
    %v194 = vpop.f32.mrb[0].mxu0
    %195 = vmatprep.mubr.f32.mxu0 0.0
    %196 = vmatmul.mubr.f32.gmra.mrb[0].mxu0 %v68
    %v197 = vpop.f32.mrb[0].mxu0
    %v198 = vadd.f32 0.0, %v197
    %v199 = vpop.f32.mrb[0].mxu0
    %200 = vmatprep.mubr.f32.mxu0 0.0
    %201 = vmatmul.mubr.f32.gmra.mrb[0].mxu0 %v71
    %v202 = vpop.f32.mrb[0].mxu0
    %v203 = vadd.f32 0.0, %v202
    %v204 = vpop.f32.mrb[0].mxu0
    %205 = vmatprep.mubr.f32.mxu0 0.0
    %206 = vmatmul.mubr.f32.gmra.mrb[0].mxu0 %v74
    %v207 = vpop.f32.mrb[0].mxu0
    %v208 = vadd.f32 0.0, %v207
    %v209 = vpop.f32.mrb[0].mxu0
    %210 = vmatprep.mubr.f32.mxu0 0.0
    %211 = vmatmul.mubr.f32.gmra.mrb[0].mxu0 %v77
    %v212 = vpop.f32.mrb[0].mxu0
    %v213 = vadd.f32 0.0, %v212
    %v214 = vpop.f32.mrb[0].mxu0
    %215 = vmatprep.mubr.f32.mxu0 0.0
    %216 = vmatmul.mubr.f32.gmra.mrb[0].mxu0 %v80
    %v217 = vpop.f32.mrb[0].mxu0
    %v218 = vadd.f32 0.0, %v217
    %v219 = vpop.f32.mrb[0].mxu0
    %220 = vmatprep.mubr.f32.mxu0 0.0
    %221 = vmatmul.mubr.f32.gmra.mrb[0].mxu0 %v83
    %v222 = vpop.f32.mrb[0].mxu0
    %v223 = vadd.f32 0.0, %v222
    %v224 = vpop.f32.mrb[0].mxu0
    %225 = vmatprep.mubr.f32.mxu0 0.0
    %226 = vmatmul.mubr.f32.gmra.mrb[0].mxu0 %v86
    %v227 = vpop.f32.mrb[0].mxu0
    %v228 = vadd.f32 0.0, %v227
    %v229 = vpop.f32.mrb[0].mxu0
    %230 = vmatprep.mubr.f32.mxu0 0.0
    %231 = vmatmul.mubr.f32.gmra.mrb[0].mxu0 %v89
    %v232 = vpop.f32.mrb[0].mxu0
    %v233 = vadd.f32 0.0, %v232
    %v234 = vpop.f32.mrb[0].mxu0
    %235 = vdwg.mxu0
    %v236 = vld [vmem:[%s2] sm:$0xff]
    %v237 = vld [vmem:[%s2 + $0x8] sm:$0xff]
    %v238 = vld [vmem:[%s2 + $0x10] sm:$0xff]
    %v239 = vld [vmem:[%s2 + $0x18] sm:$0xff]
    %v240 = vld [vmem:[%s2 + $0x20] sm:$0xff]
    %v241 = vld [vmem:[%s2 + $0x28] sm:$0xff]
    %v242 = vld [vmem:[%s2 + $0x30] sm:$0xff]
    %v243 = vld [vmem:[%s2 + $0x38] sm:$0xff]
    %v244 = vld [vmem:[%s2 + $0x40] sm:$0xff]
    %v245 = vld [vmem:[%s2 + $0x48] sm:$0xff]
    %v246 = vld [vmem:[%s2 + $0x50] sm:$0xff]
    %v247 = vld [vmem:[%s2 + $0x58] sm:$0xff]
    %v248 = vld [vmem:[%s2 + $0x60] sm:$0xff]
    %v249 = vld [vmem:[%s2 + $0x68] sm:$0xff]
    %v250 = vld [vmem:[%s2 + $0x70] sm:$0xff]
    %v251 = vld [vmem:[%s2 + $0x78] sm:$0xff]
    %v252 = vld [vmem:[%s3] sm:$0x1]
    %v254 = vlaneseq
    %v255 = vshrl.u32 %v254, 7
    %v256 = vsub.s32 0, %v255
    %v257 = vrot.slane %v252, %v256
    %259 = vmatprep.subr.mxu0 0.0
    %260 = vmatpush1.msra.mxu0 %v158
    %261 = vmatprep.subr.mxu0 0.0
    %262 = vmatpush1.msra.mxu0 %v163
    %263 = vmatprep.subr.mxu0 0.0
    %264 = vmatpush1.msra.mxu0 %v168
    %265 = vmatprep.subr.mxu0 0.0
    %266 = vmatpush1.msra.mxu0 %v173
    %267 = vmatprep.subr.mxu0 0.0
    %268 = vmatpush1.msra.mxu0 %v178
    %269 = vmatprep.subr.mxu0 0.0
    %270 = vmatpush1.msra.mxu0 %v183
    %271 = vmatprep.subr.mxu0 0.0
    %272 = vmatpush1.msra.mxu0 %v188
    %273 = vmatprep.subr.mxu0 0.0
    %274 = vmatpush1.msra.mxu0 %v193
    %275 = vmatprep.subr.mxu0 0.0
    %276 = vmatpush1.msra.mxu0 %v198
    %277 = vmatprep.subr.mxu0 0.0
    %278 = vmatpush1.msra.mxu0 %v203
    %279 = vmatprep.subr.mxu0 0.0
    %280 = vmatpush1.msra.mxu0 %v208
    %281 = vmatprep.subr.mxu0 0.0
    %282 = vmatpush1.msra.mxu0 %v213
    %283 = vmatprep.subr.mxu0 0.0
    %284 = vmatpush1.msra.mxu0 %v218
    %285 = vmatprep.subr.mxu0 0.0
    %286 = vmatpush1.msra.mxu0 %v223
    %287 = vmatprep.subr.mxu0 0.0
    %288 = vmatpush1.msra.mxu0 %v228
    %289 = vmatprep.subr.mxu0 0.0
    %290 = vmatpush1.msra.mxu0 %v233
    %291 = vmatprep.subr.mxu0 0.0
    %292 = vmatpush1.msra.mxu0 0.0
    %293 = vmatprep.subr.mxu0 0.0
    %294 = vmatpush1.msra.mxu0 0.0
    %295 = vmatprep.subr.mxu0 0.0
    %296 = vmatpush1.msra.mxu0 0.0
    %297 = vmatprep.subr.mxu0 0.0
    %298 = vmatpush1.msra.mxu0 0.0
    %299 = vmatprep.subr.mxu0 0.0
    %300 = vmatpush1.msra.mxu0 0.0
    %301 = vmatprep.subr.mxu0 0.0
    %302 = vmatpush1.msra.mxu0 0.0
    %303 = vmatprep.subr.mxu0 0.0
    %304 = vmatpush1.msra.mxu0 0.0
    %305 = vmatprep.subr.mxu0 0.0
    %306 = vmatpush1.msra.mxu0 0.0
    %307 = vmatprep.subr.mxu0 0.0
    %308 = vmatpush1.msra.mxu0 0.0
    %309 = vmatprep.subr.mxu0 0.0
    %310 = vmatpush1.msra.mxu0 0.0
    %311 = vmatprep.subr.mxu0 0.0
    %312 = vmatpush1.msra.mxu0 0.0
    %313 = vmatprep.subr.mxu0 0.0
    %314 = vmatpush1.msra.mxu0 0.0
    %315 = vmatprep.subr.mxu0 0.0
    %316 = vmatpush1.msra.mxu0 0.0
    %317 = vmatprep.subr.mxu0 0.0
    %318 = vmatpush1.msra.mxu0 0.0
    %319 = vmatprep.subr.mxu0 0.0
    %320 = vmatpush1.msra.mxu0 0.0
    %321 = vmatprep.subr.mxu0 0.0
    %322 = vmatpush1.msra.mxu0 0.0
    %323 = vmatprep.mubr.f32.mxu0 0.0
    %324 = vmatmul.mubr.f32.gmra.mrb[0].mxu0 %v236
    %v325 = vpop.f32.mrb[0].mxu0
    %v326 = vadd.f32 %v257, %v325
    %v327 = vpop.f32.mrb[0].mxu0
    %328 = vmatprep.mubr.f32.mxu0 0.0
    %329 = vmatmul.mubr.f32.gmra.mrb[0].mxu0 %v237
    %v330 = vpop.f32.mrb[0].mxu0
    %v331 = vadd.f32 %v257, %v330
    %v332 = vpop.f32.mrb[0].mxu0
    %333 = vmatprep.mubr.f32.mxu0 0.0
    %334 = vmatmul.mubr.f32.gmra.mrb[0].mxu0 %v238
    %v335 = vpop.f32.mrb[0].mxu0
    %v336 = vadd.f32 %v257, %v335
    %v337 = vpop.f32.mrb[0].mxu0
    %338 = vmatprep.mubr.f32.mxu0 0.0
    %339 = vmatmul.mubr.f32.gmra.mrb[0].mxu0 %v239
    %v340 = vpop.f32.mrb[0].mxu0
    %v341 = vadd.f32 %v257, %v340
    %v342 = vpop.f32.mrb[0].mxu0
    %343 = vmatprep.mubr.f32.mxu0 0.0
    %344 = vmatmul.mubr.f32.gmra.mrb[0].mxu0 %v240
    %v345 = vpop.f32.mrb[0].mxu0
    %v346 = vadd.f32 %v257, %v345
    %v347 = vpop.f32.mrb[0].mxu0
    %348 = vmatprep.mubr.f32.mxu0 0.0
    %349 = vmatmul.mubr.f32.gmra.mrb[0].mxu0 %v241
    %v350 = vpop.f32.mrb[0].mxu0
    %v351 = vadd.f32 %v257, %v350
    %v352 = vpop.f32.mrb[0].mxu0
    %353 = vmatprep.mubr.f32.mxu0 0.0
    %354 = vmatmul.mubr.f32.gmra.mrb[0].mxu0 %v242
    %v355 = vpop.f32.mrb[0].mxu0
    %v356 = vadd.f32 %v257, %v355
    %v357 = vpop.f32.mrb[0].mxu0
    %358 = vmatprep.mubr.f32.mxu0 0.0
    %359 = vmatmul.mubr.f32.gmra.mrb[0].mxu0 %v243
    %v360 = vpop.f32.mrb[0].mxu0
    %v361 = vadd.f32 %v257, %v360
    %v362 = vpop.f32.mrb[0].mxu0
    %363 = vmatprep.mubr.f32.mxu0 0.0
    %364 = vmatmul.mubr.f32.gmra.mrb[0].mxu0 %v244
    %v365 = vpop.f32.mrb[0].mxu0
    %v366 = vadd.f32 %v257, %v365
    %v367 = vpop.f32.mrb[0].mxu0
    %368 = vmatprep.mubr.f32.mxu0 0.0
    %369 = vmatmul.mubr.f32.gmra.mrb[0].mxu0 %v245
    %v370 = vpop.f32.mrb[0].mxu0
    %v371 = vadd.f32 %v257, %v370
    %v372 = vpop.f32.mrb[0].mxu0
    %373 = vmatprep.mubr.f32.mxu0 0.0
    %374 = vmatmul.mubr.f32.gmra.mrb[0].mxu0 %v246
    %v375 = vpop.f32.mrb[0].mxu0
    %v376 = vadd.f32 %v257, %v375
    %v377 = vpop.f32.mrb[0].mxu0
    %378 = vmatprep.mubr.f32.mxu0 0.0
    %379 = vmatmul.mubr.f32.gmra.mrb[0].mxu0 %v247
    %v380 = vpop.f32.mrb[0].mxu0
    %v381 = vadd.f32 %v257, %v380
    %v382 = vpop.f32.mrb[0].mxu0
    %383 = vmatprep.mubr.f32.mxu0 0.0
    %384 = vmatmul.mubr.f32.gmra.mrb[0].mxu0 %v248
    %v385 = vpop.f32.mrb[0].mxu0
    %v386 = vadd.f32 %v257, %v385
    %v387 = vpop.f32.mrb[0].mxu0
    %388 = vmatprep.mubr.f32.mxu0 0.0
    %389 = vmatmul.mubr.f32.gmra.mrb[0].mxu0 %v249
    %v390 = vpop.f32.mrb[0].mxu0
    %v391 = vadd.f32 %v257, %v390
    %v392 = vpop.f32.mrb[0].mxu0
    %393 = vmatprep.mubr.f32.mxu0 0.0
    %394 = vmatmul.mubr.f32.gmra.mrb[0].mxu0 %v250
    %v395 = vpop.f32.mrb[0].mxu0
    %v396 = vadd.f32 %v257, %v395
    %v397 = vpop.f32.mrb[0].mxu0
    %398 = vmatprep.mubr.f32.mxu0 0.0
    %399 = vmatmul.mubr.f32.gmra.mrb[0].mxu0 %v251
    %v400 = vpop.f32.mrb[0].mxu0
    %v401 = vadd.f32 %v257, %v400
    %v402 = vpop.f32.mrb[0].mxu0
    %403 = vdwg.mxu0
    %404 = vst [vmem:[#allocation2] sm:$0xff] %v326
    %405 = vst [vmem:[#allocation2 + $0x8] sm:$0xff] %v331
    %406 = vst [vmem:[#allocation2 + $0x10] sm:$0xff] %v336
    %407 = vst [vmem:[#allocation2 + $0x18] sm:$0xff] %v341
    %408 = vst [vmem:[#allocation2 + $0x20] sm:$0xff] %v346
    %409 = vst [vmem:[#allocation2 + $0x28] sm:$0xff] %v351
    %410 = vst [vmem:[#allocation2 + $0x30] sm:$0xff] %v356
    %411 = vst [vmem:[#allocation2 + $0x38] sm:$0xff] %v361
    %412 = vst [vmem:[#allocation2 + $0x40] sm:$0xff] %v366
    %413 = vst [vmem:[#allocation2 + $0x48] sm:$0xff] %v371
    %414 = vst [vmem:[#allocation2 + $0x50] sm:$0xff] %v376
    %415 = vst [vmem:[#allocation2 + $0x58] sm:$0xff] %v381
    %416 = vst [vmem:[#allocation2 + $0x60] sm:$0xff] %v386
    %417 = vst [vmem:[#allocation2 + $0x68] sm:$0xff] %v391
    %418 = vst [vmem:[#allocation2 + $0x70] sm:$0xff] %v396
    %419 = vst [vmem:[#allocation2 + $0x78] sm:$0xff] %v401
    // Predicated region
    $region18: #{tpu_custom_call.1} parent=1 // pred_check
      _
    $region19: #{tpu_custom_call.1} parent=1 // pred_check_branch
      %421 = sbr.rel (0) target = $region21
    $region20: #{tpu_custom_call.1} parent=1 // pred_region
      %s423 = ssub.s32 2048, 2048
      %424 = vsyncadd [#allocation3], %s423
      %s425 = sshll.u32 [#allocation2], 4
      %s426 = int_to_ptr.vmem [resolvable:$true] %s425
      %431 = dma.vmem_to_hbm [thread:$0]  %s426, 2048, %s4, [#allocation3], 128, 128, 8
    $region21: #{tpu_custom_call.1} parent=1 // pred_fallthru
      _
    // Predicated region
    $region22: #{tpu_custom_call.1} parent=1 // pred_check
      _
    $region23: #{tpu_custom_call.1} parent=1 // pred_check_branch
      %433 = sbr.rel (0) target = $region25
    $region24: #{tpu_custom_call.1} parent=1 // pred_region
      %434 = dma.done [#allocation3], 2048
    $region25: #{tpu_custom_call.1} parent=1 // pred_fallthru
      _
    %435 = vsyncpa [#allocation3], 1

</llo_original>
